<compile_context>
chip_gen: v7x
topology: tpu7x:2x2x1
jax: 0.10.0
libtpu: 0.0.40
codegen_flags: <defaults>
</compile_context>

<pallas_src>
import functools

import jax
import jax.numpy as jnp
from jax.experimental import pallas as pl
from jax.experimental.pallas import tpu as pltpu

EPS = 1e-5
_LANE = 128
_PIXEL_TILE_CAP = 32768                    # lanes/tile: ~5.8 MiB double-buffered w/ 20-ch out
_FUSED_VMEM_BUDGET = 8 * 1024 * 1024       # bytes of x + y + out for the single-call path
_VMEM_LIMIT = 32 * 1024 * 1024


def _round_up(a, b):
    return ((a + b - 1) // b) * b


# --------------------------------------------------------------------------- fused path
def _fused_kernel(x_ref, w_ref, gamma_ref, beta_ref, o_ref, *, cin, m):
    """Whole problem resident in VMEM.  x:(N,Cin,HW) w:(1,Cout2,Cin) gamma/beta:(1,Cout2,1)."""
    x = x_ref[...]
    w = w_ref[...]
    # y[n,o,p] = sum_c w[o,c] * x[n,c,p]  -- Cin broadcast-FMAs on the VPU.
    y = w[:, :, 0:1] * x[:, 0:1, :]
    for c in range(1, cin):
        y = y + w[:, :, c:c + 1] * x[:, c:c + 1, :]
    # Training-mode BN over (N, HW) per channel; centered (two-pass) variance.
    s = jnp.sum(y, axis=2, keepdims=True)              # (N, Cout2, 1)
    mean = jnp.sum(s, axis=0, keepdims=True) / m       # (1, Cout2, 1)
    d = y - mean
    s2 = jnp.sum(d * d, axis=2, keepdims=True)         # (N, Cout2, 1)
    var = jnp.sum(s2, axis=0, keepdims=True) / m       # (1, Cout2, 1)
    inv_std = jax.lax.rsqrt(var + EPS)
    o_ref[...] = d * (inv_std * gamma_ref[...]) + beta_ref[...]


# ------------------------------------------------------------------------- two-pass path
def _moments_kernel(x_ref, sum_ref, sxx_ref, *, cin):
    """Per-batch input moments.  x:(Cin,T); sum:(Cin,1); sxx:(Cin,Cin) resident over t."""
    @pl.when(pl.program_id(1) == 0)
    def _init():
        sum_ref[...] = jnp.zeros_like(sum_ref)
        sxx_ref[...] = jnp.zeros_like(sxx_ref)

    x = x_ref[...]                                       # (Cin, T)
    sum_ref[...] += jnp.sum(x, axis=1, keepdims=True)
    for c in range(cin):                                 # column c of sum_t x x^T
        sxx_ref[:, c:c + 1] += jnp.sum(x * x[c:c + 1, :], axis=1, keepdims=True)


def _conv_tile(x, w, cin):
    """x:(Cin,T) pixels-on-lanes, w:(Cout2,Cin) -> (Cout2,T) via Cin broadcast-FMAs."""
    y = w[:, 0:1] * x[0:1, :]
    for c in range(1, cin):
        y = y + w[:, c:c + 1] * x[c:c + 1, :]
    return y


def _conv_norm_kernel(x_ref, w_ref, shift_ref, o_ref, *, cin):
    # w_ref already has the BN scale folded in; epilogue is a single broadcast add.
    o_ref[...] = _conv_tile(x_ref[...], w_ref[...], cin) + shift_ref[...]


# ------------------------------------------------------------------------------- wrapper
def conv_cat_bn(x_nchw, w1, b1, w2, b2, gamma, beta, *, force_two_pass=False):
    """x_nchw:(N,Cin,H,W); w1/w2:(Cout,Cin,1,1); b1/b2:(Cout,) (cancel exactly under
    training-mode BN); gamma/beta:(2*Cout,).  Returns (N, 2*Cout, H, W) float32."""
    del b1, b2  # exact cancellation against BN's batch-mean subtraction (training mode)
    N, Cin, H, W = x_nchw.shape
    Cout = w1.shape[0]
    Cout2 = 2 * Cout
    HW = H * W
    M = N * HW

    x = x_nchw.astype(jnp.float32).reshape(N, Cin, HW)   # free reshape, no transpose
    w_cat = jnp.concatenate(
        [w1.reshape(Cout, Cin), w2.reshape(Cout, Cin)], axis=0
    ).astype(jnp.float32)                                # (Cout2, Cin)
    gamma2 = gamma.astype(jnp.float32).reshape(Cout2, 1)
    beta2 = beta.astype(jnp.float32).reshape(Cout2, 1)

    # ---- fast path: x + y + out fit comfortably in VMEM -> one launch, no recompute --
    fused_bytes = 4 * N * HW * (Cin + 2 * Cout2)
    if (not force_two_pass) and fused_bytes <= _FUSED_VMEM_BUDGET:
        out = pl.pallas_call(
            functools.partial(_fused_kernel, cin=Cin, m=float(M)),
            out_shape=jax.ShapeDtypeStruct((N, Cout2, HW), jnp.float32),
            grid=(1,),
            in_specs=[
                pl.BlockSpec((N, Cin, HW), lambda i: (0, 0, 0)),
                pl.BlockSpec((1, Cout2, Cin), lambda i: (0, 0, 0)),
                pl.BlockSpec((1, Cout2, 1), lambda i: (0, 0, 0)),
                pl.BlockSpec((1, Cout2, 1), lambda i: (0, 0, 0)),
            ],
            out_specs=pl.BlockSpec((N, Cout2, HW), lambda i: (0, 0, 0)),
            compiler_params=pltpu.CompilerParams(vmem_limit_bytes=_VMEM_LIMIT),
        )(x, w_cat.reshape(1, Cout2, Cin), gamma2.reshape(1, Cout2, 1),
          beta2.reshape(1, Cout2, 1))
        return out.reshape(N, Cout2, H, W)

    # ---- two-pass tiled path ----------------------------------------------------------
    n_t = pl.cdiv(HW, _PIXEL_TILE_CAP)
    thw = _round_up(pl.cdiv(HW, n_t), _LANE)
    hw_pad = n_t * thw
    if hw_pad != HW:
        # Zero padding contributes nothing to sum_x / sum_xx; divide by the true M.
        x = jnp.pad(x, ((0, 0), (0, 0), (0, hw_pad - HW)))

    # pass 1: per-batch input moments (N sharded across cores on v7x) ------------------
    sums, sxxs = pl.pallas_call(
        functools.partial(_moments_kernel, cin=Cin),
        out_shape=(
            jax.ShapeDtypeStruct((N, Cin, 1), jnp.float32),
            jax.ShapeDtypeStruct((N, Cin, Cin), jnp.float32),
        ),
        grid=(N, n_t),
        in_specs=[pl.BlockSpec((None, Cin, thw), lambda n, t: (n, 0, t))],
        out_specs=(
            pl.BlockSpec((None, Cin, 1), lambda n, t: (n, 0, 0)),
            pl.BlockSpec((None, Cin, Cin), lambda n, t: (n, 0, 0)),
        ),
        compiler_params=pltpu.CompilerParams(
            dimension_semantics=("parallel", "arbitrary"),
            vmem_limit_bytes=_VMEM_LIMIT),
    )(x)

    # tiny BN algebra in plain JAX: derive y-stats from x-moments ----------------------
    sum_x = jnp.sum(sums, axis=0)                        # (Cin, 1)
    sxx = jnp.sum(sxxs, axis=0)                          # (Cin, Cin)
    mean_x = sum_x / M
    cov_x = sxx / M - mean_x @ mean_x.T                  # (Cin, Cin)
    mean_y = w_cat @ mean_x                              # (Cout2, 1)
    var_y = jnp.maximum(
        jnp.sum((w_cat @ cov_x) * w_cat, axis=1, keepdims=True), 0.0)
    inv_std = jax.lax.rsqrt(var_y + EPS)
    scale = gamma2 * inv_std
    shift = beta2 - mean_y * scale
    w_scaled = w_cat * scale                             # fold BN scale into the weights

    # pass 2: o = (scale*W) x + shift, lane-dense (N, Cout2, HW) output -----------------
    out = pl.pallas_call(
        functools.partial(_conv_norm_kernel, cin=Cin),
        out_shape=jax.ShapeDtypeStruct((N, Cout2, hw_pad), jnp.float32),
        grid=(N, n_t),
        in_specs=[
            pl.BlockSpec((None, Cin, thw), lambda n, t: (n, 0, t)),
            pl.BlockSpec((Cout2, Cin), lambda n, t: (0, 0)),
            pl.BlockSpec((Cout2, 1), lambda n, t: (0, 0)),
        ],
        out_specs=pl.BlockSpec((None, Cout2, thw), lambda n, t: (n, 0, t)),
        compiler_params=pltpu.CompilerParams(
            dimension_semantics=("parallel", "parallel"),
            vmem_limit_bytes=_VMEM_LIMIT),
    )(x, w_scaled, shift)

    if hw_pad != HW:
        out = out[:, :, :HW]
    return out.reshape(N, Cout2, H, W)


# ----------------------------------------------------------------------------- reference
def reference(x_nchw, w1, b1, w2, b2, gamma, beta):
    """Pure-JAX reference of the intended forward (biases included)."""
    def conv1x1(x, w, b):
        return jnp.einsum(
            "nchw,oc->nohw", x, w.reshape(w.shape[0], w.shape[1])
        ) + b[None, :, None, None]

    o1 = conv1x1(x_nchw, w1, b1)
    o2 = conv1x1(x_nchw, w2, b2)
    o = jnp.concatenate([o1, o2], axis=1)
    mean = jnp.mean(o, axis=(0, 2, 3), keepdims=True)
    var = jnp.mean((o - mean) ** 2, axis=(0, 2, 3), keepdims=True)
    return (o - mean) / jnp.sqrt(var + EPS) * gamma[None, :, None, None] + beta[
        None, :, None, None
    ]


if __name__ == "__main__":
    key = jax.random.PRNGKey(0)
    k_x, k_w1, k_b1, k_w2, k_b2 = jax.random.split(key, 5)

    # Small shapes consistent with the module: Cin=3, two 1x1 convs of Cout=10.
    N, Cin, H, W = 2, 3, 16, 16
    Cout = 10

    x = jax.random.normal(k_x, (N, Cin, H, W), dtype=jnp.float32)

    init_scale = 1.0 / jnp.sqrt(jnp.float32(Cin))
    w1 = jax.random.normal(k_w1, (Cout, Cin, 1, 1), dtype=jnp.float32) * init_scale
    b1 = jax.random.normal(k_b1, (Cout,), dtype=jnp.float32) * init_scale
    w2 = jax.random.normal(k_w2, (Cout, Cin, 1, 1), dtype=jnp.float32) * init_scale
    b2 = jax.random.normal(k_b2, (Cout,), dtype=jnp.float32) * init_scale
    gamma = jnp.ones((2 * Cout,), dtype=jnp.float32)    # BN weight default
    beta = jnp.zeros((2 * Cout,), dtype=jnp.float32)    # BN bias default

    ref = reference(x, w1, b1, w2, b2, gamma, beta)

    # Fused (single-launch) fast path.
    out_fused = jax.block_until_ready(conv_cat_bn(x, w1, b1, w2, b2, gamma, beta))
    assert out_fused.shape == (N, 2 * Cout, H, W)
    assert jnp.allclose(out_fused, ref, atol=1e-4, rtol=1e-4), float(
        jnp.max(jnp.abs(out_fused - ref)))

    # Two-pass tiled path (used for shapes that exceed the VMEM budget).
    out_two = jax.block_until_ready(
        conv_cat_bn(x, w1, b1, w2, b2, gamma, beta, force_two_pass=True))
    assert out_two.shape == (N, 2 * Cout, H, W)
    assert jnp.allclose(out_two, ref, atol=1e-4, rtol=1e-4), float(
        jnp.max(jnp.abs(out_two - ref)))

    print("KERNEL_OK")
</pallas_src>

<mosaic_0001>
module attributes {stable_mosaic.version = 11 : i64} {
  func.func @_fused_kernel(%arg0: i32, %arg1: memref<2x3x256xf32, #tpu.memory_space<vmem>>, %arg2: memref<1x20x3xf32, #tpu.memory_space<vmem>>, %arg3: memref<1x20x1xf32, #tpu.memory_space<vmem>>, %arg4: memref<1x20x1xf32, #tpu.memory_space<vmem>>, %arg5: memref<2x20x256xf32, #tpu.memory_space<vmem>>) attributes {dimension_semantics = [#tpu.dimension_semantics<arbitrary>], iteration_bounds = array<i64: 1>, scalar_prefetch = 0 : i64, scratch_operands = 0 : i64, tpu.core_type = #tpu.core_type<tc>, window_params = [{pipeline_mode = #tpu.pipeline_mode<synchronous>, transform_indices = @transform_0, window_bounds = array<i64: 2, 3, 256>}, {pipeline_mode = #tpu.pipeline_mode<synchronous>, transform_indices = @transform_1, window_bounds = array<i64: 1, 20, 3>}, {pipeline_mode = #tpu.pipeline_mode<synchronous>, transform_indices = @transform_2, window_bounds = array<i64: 1, 20, 1>}, {pipeline_mode = #tpu.pipeline_mode<synchronous>, transform_indices = @transform_3, window_bounds = array<i64: 1, 20, 1>}, {pipeline_mode = #tpu.pipeline_mode<synchronous>, transform_indices = @transform_4, window_bounds = array<i64: 2, 20, 256>}]} {
    %c0 = arith.constant 0 : index
    %c0_0 = arith.constant 0 : index
    %c0_1 = arith.constant 0 : index
    %0 = vector.load %arg1[%c0, %c0_0, %c0_1] : memref<2x3x256xf32, #tpu.memory_space<vmem>>, vector<2x3x256xf32>
    %c0_2 = arith.constant 0 : index
    %c0_3 = arith.constant 0 : index
    %c0_4 = arith.constant 0 : index
    %1 = vector.load %arg2[%c0_2, %c0_3, %c0_4] : memref<1x20x3xf32, #tpu.memory_space<vmem>>, vector<1x20x3xf32>
    %2 = vector.extract_strided_slice %1 {offsets = [0, 0, 0], sizes = [1, 20, 1], strides = [1, 1, 1]} : vector<1x20x3xf32> to vector<1x20x1xf32>
    %3 = vector.extract_strided_slice %0 {offsets = [0, 0, 0], sizes = [2, 1, 256], strides = [1, 1, 1]} : vector<2x3x256xf32> to vector<2x1x256xf32>
    %4 = vector.broadcast %2 : vector<1x20x1xf32> to vector<2x20x256xf32>
    %5 = vector.broadcast %3 : vector<2x1x256xf32> to vector<2x20x256xf32>
    %6 = arith.mulf %4, %5 : vector<2x20x256xf32>
    %7 = vector.extract_strided_slice %1 {offsets = [0, 0, 1], sizes = [1, 20, 1], strides = [1, 1, 1]} : vector<1x20x3xf32> to vector<1x20x1xf32>
    %8 = vector.extract_strided_slice %0 {offsets = [0, 1, 0], sizes = [2, 1, 256], strides = [1, 1, 1]} : vector<2x3x256xf32> to vector<2x1x256xf32>
    %9 = vector.broadcast %7 : vector<1x20x1xf32> to vector<2x20x256xf32>
    %10 = vector.broadcast %8 : vector<2x1x256xf32> to vector<2x20x256xf32>
    %11 = arith.mulf %9, %10 : vector<2x20x256xf32>
    %12 = arith.addf %6, %11 : vector<2x20x256xf32>
    %13 = vector.extract_strided_slice %1 {offsets = [0, 0, 2], sizes = [1, 20, 1], strides = [1, 1, 1]} : vector<1x20x3xf32> to vector<1x20x1xf32>
    %14 = vector.extract_strided_slice %0 {offsets = [0, 2, 0], sizes = [2, 1, 256], strides = [1, 1, 1]} : vector<2x3x256xf32> to vector<2x1x256xf32>
    %15 = vector.broadcast %13 : vector<1x20x1xf32> to vector<2x20x256xf32>
    %16 = vector.broadcast %14 : vector<2x1x256xf32> to vector<2x20x256xf32>
    %17 = arith.mulf %15, %16 : vector<2x20x256xf32>
    %18 = arith.addf %12, %17 : vector<2x20x256xf32>
    %cst = arith.constant dense<0.000000e+00> : vector<2x20xf32>
    %19 = vector.multi_reduction <add>, %18, %cst [2] : vector<2x20x256xf32> to vector<2x20xf32>
    %20 = vector.shape_cast %19 : vector<2x20xf32> to vector<2x20x1xf32>
    %cst_5 = arith.constant dense<0.000000e+00> : vector<20x1xf32>
    %21 = vector.multi_reduction <add>, %20, %cst_5 [0] : vector<2x20x1xf32> to vector<20x1xf32>
    %22 = vector.shape_cast %21 : vector<20x1xf32> to vector<1x20x1xf32>
    %cst_6 = arith.constant 5.120000e+02 : f32
    %23 = vector.broadcast %cst_6 : f32 to vector<1x20x1xf32>
    %24 = arith.divf %22, %23 : vector<1x20x1xf32>
    %25 = vector.broadcast %24 : vector<1x20x1xf32> to vector<2x20x256xf32>
    %26 = arith.subf %18, %25 : vector<2x20x256xf32>
    %27 = arith.mulf %26, %26 : vector<2x20x256xf32>
    %cst_7 = arith.constant dense<0.000000e+00> : vector<2x20xf32>
    %28 = vector.multi_reduction <add>, %27, %cst_7 [2] : vector<2x20x256xf32> to vector<2x20xf32>
    %29 = vector.shape_cast %28 : vector<2x20xf32> to vector<2x20x1xf32>
    %cst_8 = arith.constant dense<0.000000e+00> : vector<20x1xf32>
    %30 = vector.multi_reduction <add>, %29, %cst_8 [0] : vector<2x20x1xf32> to vector<20x1xf32>
    %31 = vector.shape_cast %30 : vector<20x1xf32> to vector<1x20x1xf32>
    %cst_9 = arith.constant 5.120000e+02 : f32
    %32 = vector.broadcast %cst_9 : f32 to vector<1x20x1xf32>
    %33 = arith.divf %31, %32 : vector<1x20x1xf32>
    %cst_10 = arith.constant 9.99999974E-6 : f32
    %34 = vector.broadcast %cst_10 : f32 to vector<1x20x1xf32>
    %35 = arith.addf %33, %34 : vector<1x20x1xf32>
    %36 = math.rsqrt %35 : vector<1x20x1xf32>
    %c0_11 = arith.constant 0 : index
    %c0_12 = arith.constant 0 : index
    %c0_13 = arith.constant 0 : index
    %37 = vector.load %arg3[%c0_11, %c0_12, %c0_13] : memref<1x20x1xf32, #tpu.memory_space<vmem>>, vector<1x20x1xf32>
    %38 = arith.mulf %36, %37 : vector<1x20x1xf32>
    %39 = vector.broadcast %38 : vector<1x20x1xf32> to vector<2x20x256xf32>
    %40 = arith.mulf %26, %39 : vector<2x20x256xf32>
    %c0_14 = arith.constant 0 : index
    %c0_15 = arith.constant 0 : index
    %c0_16 = arith.constant 0 : index
    %41 = vector.load %arg4[%c0_14, %c0_15, %c0_16] : memref<1x20x1xf32, #tpu.memory_space<vmem>>, vector<1x20x1xf32>
    %42 = vector.broadcast %41 : vector<1x20x1xf32> to vector<2x20x256xf32>
    %43 = arith.addf %40, %42 : vector<2x20x256xf32>
    %c0_17 = arith.constant 0 : index
    %c0_18 = arith.constant 0 : index
    %c0_19 = arith.constant 0 : index
    %44 = vector.load %arg5[%c0_17, %c0_18, %c0_19] : memref<2x20x256xf32, #tpu.memory_space<vmem>>, vector<2x20x256xf32>
    tpu.vector_store %arg5[%c0_17, %c0_18, %c0_19], %43 {strides = array<i32>} : memref<2x20x256xf32, #tpu.memory_space<vmem>>, vector<2x20x256xf32>,
    return
  }
  func.func @transform_0(%arg0: i32) -> (i32, i32, i32) {
    %c0_i32 = arith.constant 0 : i32
    %c0_i32_0 = arith.constant 0 : i32
    %c0_i32_1 = arith.constant 0 : i32
    %c0_i32_2 = arith.constant 0 : i32
    return %c0_i32, %c0_i32_0, %c0_i32_1 : i32, i32, i32
  }
  func.func @transform_1(%arg0: i32) -> (i32, i32, i32) {
    %c0_i32 = arith.constant 0 : i32
    %c0_i32_0 = arith.constant 0 : i32
    %c0_i32_1 = arith.constant 0 : i32
    %c0_i32_2 = arith.constant 0 : i32
    return %c0_i32, %c0_i32_0, %c0_i32_1 : i32, i32, i32
  }
  func.func @transform_2(%arg0: i32) -> (i32, i32, i32) {
    %c0_i32 = arith.constant 0 : i32
    %c0_i32_0 = arith.constant 0 : i32
    %c0_i32_1 = arith.constant 0 : i32
    %c0_i32_2 = arith.constant 0 : i32
    return %c0_i32, %c0_i32_0, %c0_i32_1 : i32, i32, i32
  }
  func.func @transform_3(%arg0: i32) -> (i32, i32, i32) {
    %c0_i32 = arith.constant 0 : i32
    %c0_i32_0 = arith.constant 0 : i32
    %c0_i32_1 = arith.constant 0 : i32
    %c0_i32_2 = arith.constant 0 : i32
    return %c0_i32, %c0_i32_0, %c0_i32_1 : i32, i32, i32
  }
  func.func @transform_4(%arg0: i32) -> (i32, i32, i32) {
    %c0_i32 = arith.constant 0 : i32
    %c0_i32_0 = arith.constant 0 : i32
    %c0_i32_1 = arith.constant 0 : i32
    %c0_i32_2 = arith.constant 0 : i32
    return %c0_i32, %c0_i32_0, %c0_i32_1 : i32, i32, i32
  }
}

</mosaic_0001>

<llo_original>
// kernel: tpu_custom_call.1
$region0: #{tpu_custom_call.1}
  #allocation0 [shape = 'u32[]', space=smem, size = 0x4, offset = 0x4, fixed_abs, tag = 'smem constant byte address 0x4 - core index']
  #allocation1 [shape = 'u32[144,128]{1,0:T(1,128)}', space=vmem, size = 0x12000, scoped, tag = 'internal scratch']
  %s0 = inlined_call_operand.vmem [shape: f32[2,3,256], index: 0, kind: input, shape index: {}]
  %s1 = inlined_call_operand.vmem [shape: f32[1,20,3], index: 1, kind: input, shape index: {}]
  %s2 = inlined_call_operand.vmem [shape: f32[1,20,1], index: 2, kind: input, shape index: {}]
  %s3 = inlined_call_operand.vmem [shape: f32[1,20,1], index: 3, kind: input, shape index: {}]
  %s4 = inlined_call_operand.vmem [shape: f32[2,20,256], index: 4, kind: output, shape index: {}]
  %s5 = sld [smem:[#allocation0]]
  $region26: #{tpu_custom_call.1} parent=0
    _
  %s7 = ssub.s32 1, %s5
  %s8 = scalar_select 0, %s7, %s5
  // Predicated region
  $region2: #{tpu_custom_call.1} parent=0 // pred_check
    _
  $region3: #{tpu_custom_call.1} parent=0 // pred_check_branch
    %10 = sbr.rel (0) target = $region5
  $region4: #{tpu_custom_call.1} parent=0 // pred_region
    _
  $region5: #{tpu_custom_call.1} parent=0 // pred_fallthru
    _
  // Predicated region
  $region6: #{tpu_custom_call.1} parent=0 // pred_check
    _
  $region7: #{tpu_custom_call.1} parent=0 // pred_check_branch
    %12 = sbr.rel (0) target = $region9
  $region8: #{tpu_custom_call.1} parent=0 // pred_region
    _
  $region9: #{tpu_custom_call.1} parent=0 // pred_fallthru
    _
  // Predicated region
  $region10: #{tpu_custom_call.1} parent=0 // pred_check
    _
  $region11: #{tpu_custom_call.1} parent=0 // pred_check_branch
    %14 = sbr.rel (0) target = $region13
  $region12: #{tpu_custom_call.1} parent=0 // pred_region
    _
  $region13: #{tpu_custom_call.1} parent=0 // pred_fallthru
    _
  // Predicated region
  $region14: #{tpu_custom_call.1} parent=0 // pred_check
    _
  $region15: #{tpu_custom_call.1} parent=0 // pred_check_branch
    %16 = sbr.rel (0) target = $region17
  $region16: #{tpu_custom_call.1} parent=0 // pred_region
    _
  $region17: #{tpu_custom_call.1} parent=0 // pred_fallthru
    _
  %v17 = vld [vmem:[%s0] sm:$0x77]
  %v18 = vld [vmem:[%s0 + $0x8] sm:$0x77]
  %v19 = vld [vmem:[%s1] sm:$0xff]
  %v20 = vld [vmem:[%s1 + $0x8] sm:$0xff]
  %v21 = vld [vmem:[%s1 + $0x10] sm:$0xf]
  %23 = vset.pattern.permute.xlu0 0
  %24 = vperm.xlu0 %23, %v19
  %v25 = vpop.permute.xlu0 %24
  %28 = vset.pattern.permute.xlu0 0
  %29 = vperm.xlu0 %28, %v20
  %v30 = vpop.permute.xlu0 %29
  %33 = vset.pattern.permute.xlu0 0
  %34 = vperm.xlu0 %33, %v21
  %v35 = vpop.permute.xlu0 %34
  %v39 = vlaneseq
  %v40 = vshrl.u32 %v39, 7
  %v41 = vsub.s32 0, %v40
  %v42 = vrot.slane %v17, %v41
  %v43 = vlaneseq
  %v44 = vshrl.u32 %v43, 7
  %v45 = vsub.s32 4, %v44
  %v46 = vrot.slane %v17, %v45
  %v47 = vlaneseq
  %v48 = vshrl.u32 %v47, 7
  %v49 = vsub.s32 0, %v48
  %v50 = vrot.slane %v18, %v49
  %v51 = vlaneseq
  %v52 = vshrl.u32 %v51, 7
  %v53 = vsub.s32 4, %v52
  %v54 = vrot.slane %v18, %v53
  %v59 = vlaneseq
  %v60 = vshrl.u32 %v59, 7
  %v61 = vsub.s32 0, %v60
  %v62 = vrot.slane %v42, %v61
  %v63 = vlaneseq
  %v64 = vshrl.u32 %v63, 7
  %v65 = vsub.s32 0, %v64
  %v66 = vrot.slane %v46, %v65
  %v67 = vlaneseq
  %v68 = vshrl.u32 %v67, 7
  %v69 = vsub.s32 0, %v68
  %v70 = vrot.slane %v50, %v69
  %v71 = vlaneseq
  %v72 = vshrl.u32 %v71, 7
  %v73 = vsub.s32 0, %v72
  %v74 = vrot.slane %v54, %v73
  %v75 = vmul.f32 %v25, %v62
  %v76 = vmul.f32 %v25, %v66
  %v77 = vmul.f32 %v30, %v62
  %v78 = vmul.f32 %v30, %v66
  %v79 = vmul.f32 %v35, %v62
  %v80 = vmul.f32 %v35, %v66
  %v81 = vmul.f32 %v25, %v70
  %v82 = vmul.f32 %v25, %v74
  %v83 = vmul.f32 %v30, %v70
  %v84 = vmul.f32 %v30, %v74
  %v85 = vmul.f32 %v35, %v70
  %v86 = vmul.f32 %v35, %v74
  %87 = vset.pattern.permute.xlu0 1
  %88 = vperm.xlu0 %87, %v19
  %v89 = vpop.permute.xlu0 %88
  %91 = vset.pattern.permute.xlu0 1
  %92 = vperm.xlu0 %91, %v20
  %v93 = vpop.permute.xlu0 %92
  %95 = vset.pattern.permute.xlu0 1
  %96 = vperm.xlu0 %95, %v21
  %v97 = vpop.permute.xlu0 %96
  %v99 = vlaneseq
  %v100 = vshrl.u32 %v99, 7
  %v101 = vsub.s32 1, %v100
  %v102 = vrot.slane %v17, %v101
  %v103 = vlaneseq
  %v104 = vshrl.u32 %v103, 7
  %v105 = vsub.s32 5, %v104
  %v106 = vrot.slane %v17, %v105
  %v107 = vlaneseq
  %v108 = vshrl.u32 %v107, 7
  %v109 = vsub.s32 1, %v108
  %v110 = vrot.slane %v18, %v109
  %v111 = vlaneseq
  %v112 = vshrl.u32 %v111, 7
  %v113 = vsub.s32 5, %v112
  %v114 = vrot.slane %v18, %v113
  %v119 = vlaneseq
  %v120 = vshrl.u32 %v119, 7
  %v121 = vsub.s32 1, %v120
  %v122 = vrot.slane %v102, %v121
  %v123 = vlaneseq
  %v124 = vshrl.u32 %v123, 7
  %v125 = vsub.s32 1, %v124
  %v126 = vrot.slane %v106, %v125
  %v127 = vlaneseq
  %v128 = vshrl.u32 %v127, 7
  %v129 = vsub.s32 1, %v128
  %v130 = vrot.slane %v110, %v129
  %v131 = vlaneseq
  %v132 = vshrl.u32 %v131, 7
  %v133 = vsub.s32 1, %v132
  %v134 = vrot.slane %v114, %v133
  %v135 = vmul.f32 %v89, %v122
  %v136 = vmul.f32 %v89, %v126
  %v137 = vmul.f32 %v93, %v122
  %v138 = vmul.f32 %v93, %v126
  %v139 = vmul.f32 %v97, %v122
  %v140 = vmul.f32 %v97, %v126
  %v141 = vmul.f32 %v89, %v130
  %v142 = vmul.f32 %v89, %v134
  %v143 = vmul.f32 %v93, %v130
  %v144 = vmul.f32 %v93, %v134
  %v145 = vmul.f32 %v97, %v130
  %v146 = vmul.f32 %v97, %v134
  %v147 = vadd.f32 %v75, %v135
  %v148 = vadd.f32 %v76, %v136
  %v149 = vadd.f32 %v77, %v137
  %v150 = vadd.f32 %v78, %v138
  %v151 = vadd.f32 %v79, %v139
  %v152 = vadd.f32 %v80, %v140
  %v153 = vadd.f32 %v81, %v141
  %v154 = vadd.f32 %v82, %v142
  %v155 = vadd.f32 %v83, %v143
  %v156 = vadd.f32 %v84, %v144
  %v157 = vadd.f32 %v85, %v145
  %v158 = vadd.f32 %v86, %v146
  %159 = vset.pattern.permute.xlu0 2
  %160 = vperm.xlu0 %159, %v19
  %v161 = vpop.permute.xlu0 %160
  %163 = vset.pattern.permute.xlu0 2
  %164 = vperm.xlu0 %163, %v20
  %v165 = vpop.permute.xlu0 %164
  %167 = vset.pattern.permute.xlu0 2
  %168 = vperm.xlu0 %167, %v21
  %v169 = vpop.permute.xlu0 %168
  %v171 = vlaneseq
  %v172 = vshrl.u32 %v171, 7
  %v173 = vsub.s32 2, %v172
  %v174 = vrot.slane %v17, %v173
  %v175 = vlaneseq
  %v176 = vshrl.u32 %v175, 7
  %v177 = vsub.s32 6, %v176
  %v178 = vrot.slane %v17, %v177
  %v179 = vlaneseq
  %v180 = vshrl.u32 %v179, 7
  %v181 = vsub.s32 2, %v180
  %v182 = vrot.slane %v18, %v181
  %v183 = vlaneseq
  %v184 = vshrl.u32 %v183, 7
  %v185 = vsub.s32 6, %v184
  %v186 = vrot.slane %v18, %v185
  %v191 = vlaneseq
  %v192 = vshrl.u32 %v191, 7
  %v193 = vsub.s32 2, %v192
  %v194 = vrot.slane %v174, %v193
  %v195 = vlaneseq
  %v196 = vshrl.u32 %v195, 7
  %v197 = vsub.s32 2, %v196
  %v198 = vrot.slane %v178, %v197
  %v199 = vlaneseq
  %v200 = vshrl.u32 %v199, 7
  %v201 = vsub.s32 2, %v200
  %v202 = vrot.slane %v182, %v201
  %v203 = vlaneseq
  %v204 = vshrl.u32 %v203, 7
  %v205 = vsub.s32 2, %v204
  %v206 = vrot.slane %v186, %v205
  %v207 = vmul.f32 %v161, %v194
  %v208 = vmul.f32 %v161, %v198
  %v209 = vmul.f32 %v165, %v194
  %v210 = vmul.f32 %v165, %v198
  %v211 = vmul.f32 %v169, %v194
  %v212 = vmul.f32 %v169, %v198
  %v213 = vmul.f32 %v161, %v202
  %v214 = vmul.f32 %v161, %v206
  %v215 = vmul.f32 %v165, %v202
  %v216 = vmul.f32 %v165, %v206
  %v217 = vmul.f32 %v169, %v202
  %v218 = vmul.f32 %v169, %v206
  %v219 = vadd.f32 %v147, %v207
  %v220 = vadd.f32 %v148, %v208
  %v221 = vadd.f32 %v149, %v209
  %v222 = vadd.f32 %v150, %v210
  %v223 = vadd.f32 %v151, %v211
  %v224 = vadd.f32 %v152, %v212
  %v225 = vadd.f32 %v153, %v213
  %v226 = vadd.f32 %v154, %v214
  %v227 = vadd.f32 %v155, %v215
  %v228 = vadd.f32 %v156, %v216
  %v229 = vadd.f32 %v157, %v217
  %v230 = vadd.f32 %v158, %v218
  %v231 = vadd.f32 %v219, %v220
  %232 = vadd.xlane.f32.xlu0 %v231
  %v233 = vpop.xlane.xlu0 %232
  %v234 = vadd.f32 %v221, %v222
  %235 = vadd.xlane.f32.xlu0 %v234
  %v236 = vpop.xlane.xlu0 %235
  %vm237 = vcmask 1043456
  %v238 = vsel %vm237, %v223, 0.0
  %v239 = vsel %vm237, %v224, 0.0
  %v240 = vadd.f32 %v238, %v239
  %241 = vadd.xlane.f32.xlu0 %v240
  %v242 = vpop.xlane.xlu0 %241
  %v243 = vadd.f32 %v225, %v226
  %244 = vadd.xlane.f32.xlu0 %v243
  %v245 = vpop.xlane.xlu0 %244
  %v246 = vadd.f32 %v227, %v228
  %247 = vadd.xlane.f32.xlu0 %v246
  %v248 = vpop.xlane.xlu0 %247
  %v249 = vsel %vm237, %v229, 0.0
  %v250 = vsel %vm237, %v230, 0.0
  %v251 = vadd.f32 %v249, %v250
  %252 = vadd.xlane.f32.xlu0 %v251
  %v253 = vpop.xlane.xlu0 %252
  %v254 = vadd.f32 %v233, %v245
  %v255 = vadd.f32 %v236, %v248
  %v256 = vsel %vm237, %v242, 0.0
  %v257 = vsel %vm237, %v253, 0.0
  %v258 = vadd.f32 %v256, %v257
  %v259 = vrcp.pop 512.0
  %v260 = vmul.f32 %v254, %v259
  %v261 = vmul.f32 %v255, %v259
  %v262 = vmul.f32 %v258, %v259
  %v263 = vsub.f32 %v219, %v260
  %v264 = vsub.f32 %v220, %v260
  %v265 = vsub.f32 %v221, %v261
  %v266 = vsub.f32 %v222, %v261
  %v267 = vsub.f32 %v223, %v262
  %v268 = vsub.f32 %v224, %v262
  %v269 = vsub.f32 %v225, %v260
  %v270 = vsub.f32 %v226, %v260
  %v271 = vsub.f32 %v227, %v261
  %v272 = vsub.f32 %v228, %v261
  %v273 = vsub.f32 %v229, %v262
  %v274 = vsub.f32 %v230, %v262
  %v275 = vmul.f32 %v263, %v263
  %v276 = vmul.f32 %v264, %v264
  %v277 = vmul.f32 %v265, %v265
  %v278 = vmul.f32 %v266, %v266
  %v279 = vmul.f32 %v267, %v267
  %v280 = vmul.f32 %v268, %v268
  %v281 = vmul.f32 %v269, %v269
  %v282 = vmul.f32 %v270, %v270
  %v283 = vmul.f32 %v271, %v271
  %v284 = vmul.f32 %v272, %v272
  %v285 = vmul.f32 %v273, %v273
  %v286 = vmul.f32 %v274, %v274
  %v287 = vadd.f32 %v275, %v276
  %288 = vadd.xlane.f32.xlu0 %v287
  %v289 = vpop.xlane.xlu0 %288
  %v290 = vadd.f32 %v277, %v278
  %291 = vadd.xlane.f32.xlu0 %v290
  %v292 = vpop.xlane.xlu0 %291
  %v293 = vsel %vm237, %v279, 0.0
  %v294 = vsel %vm237, %v280, 0.0
  %v295 = vadd.f32 %v293, %v294
  %296 = vadd.xlane.f32.xlu0 %v295
  %v297 = vpop.xlane.xlu0 %296
  %v298 = vadd.f32 %v281, %v282
  %299 = vadd.xlane.f32.xlu0 %v298
  %v300 = vpop.xlane.xlu0 %299
  %v301 = vadd.f32 %v283, %v284
  %302 = vadd.xlane.f32.xlu0 %v301
  %v303 = vpop.xlane.xlu0 %302
  %v304 = vsel %vm237, %v285, 0.0
  %v305 = vsel %vm237, %v286, 0.0
  %v306 = vadd.f32 %v304, %v305
  %307 = vadd.xlane.f32.xlu0 %v306
  %v308 = vpop.xlane.xlu0 %307
  %v309 = vadd.f32 %v289, %v300
  %v310 = vadd.f32 %v292, %v303
  %v311 = vsel %vm237, %v297, 0.0
  %v312 = vsel %vm237, %v308, 0.0
  %v313 = vadd.f32 %v311, %v312
  %v314 = vmul.f32 %v309, %v259
  %v315 = vmul.f32 %v310, %v259
  %v316 = vmul.f32 %v313, %v259
  %v317 = vadd.f32 %v314, 1e-05
  %v318 = vadd.f32 %v315, 1e-05
  %v319 = vadd.f32 %v316, 1e-05
  %v320 = vrsqrt.pop %v317
  %v321 = vrsqrt.pop %v318
  %v322 = vrsqrt.pop %v319
  %v323 = vld [vmem:[%s2] sm:$0xff]
  %v324 = vld [vmem:[%s2 + $0x8] sm:$0xff]
  %v325 = vld [vmem:[%s2 + $0x10] sm:$0xf]
  %v326 = vmul.f32 %v320, %v323
  %v327 = vmul.f32 %v321, %v324
  %v328 = vmul.f32 %v322, %v325
  %330 = vset.pattern.permute.xlu0 0
  %331 = vperm.xlu0 %330, %v326
  %v332 = vpop.permute.xlu0 %331
  %335 = vset.pattern.permute.xlu0 0
  %336 = vperm.xlu0 %335, %v327
  %v337 = vpop.permute.xlu0 %336
  %340 = vset.pattern.permute.xlu0 0
  %341 = vperm.xlu0 %340, %v328
  %v342 = vpop.permute.xlu0 %341
  %v344 = vmul.f32 %v263, %v332
  %v345 = vmul.f32 %v264, %v332
  %v346 = vmul.f32 %v265, %v337
  %v347 = vmul.f32 %v266, %v337
  %v348 = vmul.f32 %v267, %v342
  %v349 = vmul.f32 %v268, %v342
  %v350 = vmul.f32 %v269, %v332
  %v351 = vmul.f32 %v270, %v332
  %v352 = vmul.f32 %v271, %v337
  %v353 = vmul.f32 %v272, %v337
  %v354 = vmul.f32 %v273, %v342
  %v355 = vmul.f32 %v274, %v342
  %v356 = vld [vmem:[%s3] sm:$0xff]
  %v357 = vld [vmem:[%s3 + $0x8] sm:$0xff]
  %v358 = vld [vmem:[%s3 + $0x10] sm:$0xf]
  %360 = vset.pattern.permute.xlu0 0
  %361 = vperm.xlu0 %360, %v356
  %v362 = vpop.permute.xlu0 %361
  %365 = vset.pattern.permute.xlu0 0
  %366 = vperm.xlu0 %365, %v357
  %v367 = vpop.permute.xlu0 %366
  %370 = vset.pattern.permute.xlu0 0
  %371 = vperm.xlu0 %370, %v358
  %v372 = vpop.permute.xlu0 %371
  %v374 = vadd.f32 %v344, %v362
  %v375 = vadd.f32 %v345, %v362
  %v376 = vadd.f32 %v346, %v367
  %v377 = vadd.f32 %v347, %v367
  %v378 = vadd.f32 %v348, %v372
  %v379 = vadd.f32 %v349, %v372
  %v380 = vadd.f32 %v350, %v362
  %v381 = vadd.f32 %v351, %v362
  %v382 = vadd.f32 %v352, %v367
  %v383 = vadd.f32 %v353, %v367
  %v384 = vadd.f32 %v354, %v372
  %v385 = vadd.f32 %v355, %v372
  %386 = vst [vmem:[%s4] sm:$0xff] %v374
  %387 = vst [vmem:[%s4 + $0x8] sm:$0xff] %v375
  %388 = vst [vmem:[%s4 + $0x10] sm:$0xff] %v376
  %389 = vst [vmem:[%s4 + $0x18] sm:$0xff] %v377
  %390 = vst [vmem:[%s4 + $0x20] sm:$0xf] %v378
  %391 = vst [vmem:[%s4 + $0x28] sm:$0xf] %v379
  %392 = vst [vmem:[%s4 + $0x30] sm:$0xff] %v380
  %393 = vst [vmem:[%s4 + $0x38] sm:$0xff] %v381
  %394 = vst [vmem:[%s4 + $0x40] sm:$0xff] %v382
  %395 = vst [vmem:[%s4 + $0x48] sm:$0xff] %v383
  %396 = vst [vmem:[%s4 + $0x50] sm:$0xf] %v384
  %397 = vst [vmem:[%s4 + $0x58] sm:$0xf] %v385
  // Predicated region
  $region18: #{tpu_custom_call.1} parent=0 // pred_check
    _
  $region19: #{tpu_custom_call.1} parent=0 // pred_check_branch
    %399 = sbr.rel (0) target = $region21
  $region20: #{tpu_custom_call.1} parent=0 // pred_region
    _
  $region21: #{tpu_custom_call.1} parent=0 // pred_fallthru
    _
  // Predicated region
  $region22: #{tpu_custom_call.1} parent=0 // pred_check
    _
  $region23: #{tpu_custom_call.1} parent=0 // pred_check_branch
    %401 = sbr.rel (0) target = $region25
  $region24: #{tpu_custom_call.1} parent=0 // pred_region
    _
  $region25: #{tpu_custom_call.1} parent=0 // pred_fallthru
    _

</llo_original>
